<compile_context>
chip_gen: v7x
topology: tpu7x:2x2x1
jax: 0.10.0
libtpu: 0.0.40
codegen_flags: <defaults>
</compile_context>

<pallas_src>
import functools

import jax
import jax.numpy as jnp
from jax.experimental import pallas as pl
from jax.experimental.pallas import tpu as pltpu

LN_EPS = 1e-5

# Row layout of the packed (8, H) vector-parameter array.
ROW_B_IN = 0      # [bs | ba]
ROW_G_IN = 1      # [gamma_s | gamma_a]
ROW_BETA_IN = 2   # [beta_s | beta_a]
ROW_B_C = 3       # bc
ROW_G_C = 4       # gamma_c
ROW_BETA_C = 5    # beta_c
ROW_W_OUT = 6     # Wo as a row (H,)
ROW_B_OUT = 7     # bo broadcast across the row


def critic_kernel(x_ref, w_in_ref, w_c_ref, vec_ref, out_ref, *, half):
    """One batch tile of the fused Critic forward pass."""
    h_dim = w_c_ref.shape[1]
    inv_half = 1.0 / float(half)
    inv_h = 1.0 / float(h_dim)

    vecs = vec_ref[...]                                   # (8, H)
    b_in = vecs[ROW_B_IN:ROW_B_IN + 1, :]
    g_in = vecs[ROW_G_IN:ROW_G_IN + 1, :]
    beta_in = vecs[ROW_BETA_IN:ROW_BETA_IN + 1, :]
    b_c = vecs[ROW_B_C:ROW_B_C + 1, :]
    g_c = vecs[ROW_G_C:ROW_G_C + 1, :]
    beta_c = vecs[ROW_BETA_C:ROW_BETA_C + 1, :]
    w_out = vecs[ROW_W_OUT:ROW_W_OUT + 1, :]
    b_out = vecs[ROW_B_OUT:ROW_B_OUT + 1, 0:1]

    # --- fused state+action branch: one Linear over the block-diag weight ---
    x = x_ref[...]                                        # (TB, S+A)
    h = jnp.dot(x, w_in_ref[...],
                preferred_element_type=jnp.float32) + b_in  # (TB, H)
    h = jnp.maximum(h, 0.0)

    # Per-half LayerNorm via lane masks (lanes [0:half] = state branch,
    # lanes [half:H] = action branch).  No concat / lane slicing needed.
    lane = jax.lax.broadcasted_iota(jnp.int32, h.shape, 1)
    is_state = lane < half
    h_s = jnp.where(is_state, h, jnp.zeros_like(h))
    h_a = h - h_s                                         # other half

    s1_s = jnp.sum(h_s, axis=-1, keepdims=True)
    s1_a = jnp.sum(h_a, axis=-1, keepdims=True)
    s2_s = jnp.sum(h_s * h_s, axis=-1, keepdims=True)
    s2_a = jnp.sum(h_a * h_a, axis=-1, keepdims=True)
    mu_s = s1_s * inv_half
    mu_a = s1_a * inv_half
    var_s = s2_s * inv_half - mu_s * mu_s
    var_a = s2_a * inv_half - mu_a * mu_a

    mu = jnp.where(is_state, mu_s, mu_a)
    var = jnp.where(is_state, var_s, var_a)
    feat = (h - mu) * jax.lax.rsqrt(var + LN_EPS)
    feat = feat * g_in + beta_in                          # == concat(sf, af)

    # --- combined layer: single K=H MXU dot + ReLU + LayerNorm ---
    hc = jnp.dot(feat, w_c_ref[...],
                 preferred_element_type=jnp.float32) + b_c
    hc = jnp.maximum(hc, 0.0)
    mu_c = jnp.sum(hc, axis=-1, keepdims=True) * inv_h
    s2_c = jnp.sum(hc * hc, axis=-1, keepdims=True) * inv_h
    var_c = s2_c - mu_c * mu_c
    cf = (hc - mu_c) * jax.lax.rsqrt(var_c + LN_EPS)
    cf = cf * g_c + beta_c

    # --- output head on VPU/XLU (no padded MXU pass for N=1) ---
    out_ref[...] = jnp.sum(cf * w_out, axis=-1, keepdims=True) + b_out


@functools.partial(jax.jit, static_argnames=("block_b",))
def critic_forward(state, action, w_in, w_c, vecs, *, block_b=256):
    """Run the fused Critic kernel, tiled over batch."""
    B = state.shape[0]
    in_dim = state.shape[1] + action.shape[1]
    h_dim = w_c.shape[1]
    half = h_dim // 2

    x = jnp.concatenate([state, action], axis=1).astype(jnp.float32)

    tb = min(block_b, B)
    n_blocks = pl.cdiv(B, tb)
    b_pad = n_blocks * tb
    if b_pad != B:
        x = jnp.pad(x, ((0, b_pad - B), (0, 0)))

    kernel = functools.partial(critic_kernel, half=half)

    out = pl.pallas_call(
        kernel,
        out_shape=jax.ShapeDtypeStruct((b_pad, 1), jnp.float32),
        grid=(n_blocks,),
        in_specs=[
            pl.BlockSpec((tb, in_dim), lambda i: (i, 0)),      # batch tile
            pl.BlockSpec((in_dim, h_dim), lambda i: (0, 0)),   # resident
            pl.BlockSpec((h_dim, h_dim), lambda i: (0, 0)),    # resident
            pl.BlockSpec((8, h_dim), lambda i: (0, 0)),        # resident
        ],
        out_specs=pl.BlockSpec((tb, 1), lambda i: (i, 0)),
        compiler_params=pltpu.CompilerParams(
            dimension_semantics=("parallel",)),
    )(x, w_in, w_c, vecs)
    return out[:B]


def init_critic_params(key, state_size, action_size, hidden_size=256):
    """Deterministic init mirroring nn.Linear (uniform +/- 1/sqrt(fan_in))
    and nn.LayerNorm (gamma=1, beta=0); weights stored as (in, out)."""
    half = hidden_size // 2
    ks = jax.random.split(key, 8)

    def linear(kw, kb, fan_in, fan_out):
        bound = 1.0 / jnp.sqrt(fan_in)
        w = jax.random.uniform(kw, (fan_in, fan_out), jnp.float32, -bound, bound)
        b = jax.random.uniform(kb, (1, fan_out), jnp.float32, -bound, bound)
        return w, b

    ws, bs = linear(ks[0], ks[1], state_size, half)
    wa, ba = linear(ks[2], ks[3], action_size, half)
    wc, bc = linear(ks[4], ks[5], hidden_size, hidden_size)
    wo, bo = linear(ks[6], ks[7], hidden_size, 1)

    gs, betas = jnp.ones((1, half), jnp.float32), jnp.zeros((1, half), jnp.float32)
    ga, betaa = jnp.ones((1, half), jnp.float32), jnp.zeros((1, half), jnp.float32)
    gc, betac = jnp.ones((1, hidden_size), jnp.float32), jnp.zeros((1, hidden_size), jnp.float32)

    return (ws, bs, gs, betas,
            wa, ba, ga, betaa,
            wc, bc, gc, betac,
            wo, bo)


def pack_critic_params(params, state_size, action_size):
    """Pack raw params into the three kernel inputs:
       - block-diagonal fused input weight (S+A, H)
       - combined weight (H, H)
       - (8, H) packed vector params."""
    (ws, bs, gs, betas, wa, ba, ga, betaa, wc, bc, gc, betac, wo, bo) = params
    half = ws.shape[1]
    h_dim = 2 * half
    s, a = state_size, action_size

    w_in = jnp.zeros((s + a, h_dim), jnp.float32)
    w_in = w_in.at[:s, :half].set(ws)
    w_in = w_in.at[s:, half:].set(wa)

    vecs = jnp.zeros((8, h_dim), jnp.float32)
    vecs = vecs.at[ROW_B_IN].set(jnp.concatenate([bs, ba], axis=1)[0])
    vecs = vecs.at[ROW_G_IN].set(jnp.concatenate([gs, ga], axis=1)[0])
    vecs = vecs.at[ROW_BETA_IN].set(jnp.concatenate([betas, betaa], axis=1)[0])
    vecs = vecs.at[ROW_B_C].set(bc[0])
    vecs = vecs.at[ROW_G_C].set(gc[0])
    vecs = vecs.at[ROW_BETA_C].set(betac[0])
    vecs = vecs.at[ROW_W_OUT].set(wo[:, 0])
    vecs = vecs.at[ROW_B_OUT].set(jnp.full((h_dim,), bo[0, 0], jnp.float32))

    return w_in, wc, vecs


def critic_reference(state, action, params):
    """Pure-JAX reference matching the PyTorch module exactly."""
    (ws, bs, gs, betas, wa, ba, ga, betaa, wc, bc, gc, betac, wo, bo) = params

    def ln(h, g, b):
        mu = jnp.mean(h, axis=-1, keepdims=True)
        var = jnp.mean((h - mu) ** 2, axis=-1, keepdims=True)
        return (h - mu) / jnp.sqrt(var + LN_EPS) * g + b

    sf = ln(jax.nn.relu(state @ ws + bs), gs, betas)
    af = ln(jax.nn.relu(action @ wa + ba), ga, betaa)
    comb = jnp.concatenate([sf, af], axis=1)
    cf = ln(jax.nn.relu(comb @ wc + bc), gc, betac)
    return cf @ wo + bo


if __name__ == "__main__":
    # Small shapes consistent with Critic(state_size, action_size, hidden_size).
    B, STATE, ACTION, HIDDEN = 8, 16, 8, 32

    key = jax.random.PRNGKey(0)
    k_state, k_action, k_params = jax.random.split(key, 3)

    state = jax.random.normal(k_state, (B, STATE), jnp.float32)
    action = jax.random.normal(k_action, (B, ACTION), jnp.float32)
    params = init_critic_params(k_params, STATE, ACTION, HIDDEN)
    w_in, w_c, vecs = pack_critic_params(params, STATE, ACTION)

    out = critic_forward(state, action, w_in, w_c, vecs)
    out = jax.block_until_ready(out)

    ref = critic_reference(state, action, params)
    assert out.shape == (B, 1), out.shape
    assert jnp.allclose(out, ref, atol=1e-4, rtol=1e-4), (out, ref)

    print("KERNEL_OK")
</pallas_src>

<mosaic_0001>
module attributes {stable_mosaic.version = 11 : i64} {
  func.func @critic_kernel(%arg0: i32, %arg1: memref<8x24xf32, #tpu.memory_space<vmem>>, %arg2: memref<24x32xf32, #tpu.memory_space<vmem>>, %arg3: memref<32x32xf32, #tpu.memory_space<vmem>>, %arg4: memref<8x32xf32, #tpu.memory_space<vmem>>, %arg5: memref<8x1xf32, #tpu.memory_space<vmem>>) attributes {dimension_semantics = [#tpu.dimension_semantics<parallel>], iteration_bounds = array<i64: 1>, scalar_prefetch = 0 : i64, scratch_operands = 0 : i64, tpu.core_type = #tpu.core_type<tc>, window_params = [{transform_indices = @transform_0, window_bounds = array<i64: 8, 24>}, {pipeline_mode = #tpu.pipeline_mode<synchronous>, transform_indices = @transform_1, window_bounds = array<i64: 24, 32>}, {pipeline_mode = #tpu.pipeline_mode<synchronous>, transform_indices = @transform_2, window_bounds = array<i64: 32, 32>}, {pipeline_mode = #tpu.pipeline_mode<synchronous>, transform_indices = @transform_3, window_bounds = array<i64: 8, 32>}, {transform_indices = @transform_4, window_bounds = array<i64: 8, 1>}]} {
    %c0 = arith.constant 0 : index
    %c0_0 = arith.constant 0 : index
    %0 = vector.load %arg4[%c0, %c0_0] : memref<8x32xf32, #tpu.memory_space<vmem>>, vector<8x32xf32>
    %1 = vector.extract_strided_slice %0 {offsets = [0, 0], sizes = [1, 32], strides = [1, 1]} : vector<8x32xf32> to vector<1x32xf32>
    %2 = vector.extract_strided_slice %0 {offsets = [1, 0], sizes = [1, 32], strides = [1, 1]} : vector<8x32xf32> to vector<1x32xf32>
    %3 = vector.extract_strided_slice %0 {offsets = [2, 0], sizes = [1, 32], strides = [1, 1]} : vector<8x32xf32> to vector<1x32xf32>
    %4 = vector.extract_strided_slice %0 {offsets = [3, 0], sizes = [1, 32], strides = [1, 1]} : vector<8x32xf32> to vector<1x32xf32>
    %5 = vector.extract_strided_slice %0 {offsets = [4, 0], sizes = [1, 32], strides = [1, 1]} : vector<8x32xf32> to vector<1x32xf32>
    %6 = vector.extract_strided_slice %0 {offsets = [5, 0], sizes = [1, 32], strides = [1, 1]} : vector<8x32xf32> to vector<1x32xf32>
    %7 = vector.extract_strided_slice %0 {offsets = [6, 0], sizes = [1, 32], strides = [1, 1]} : vector<8x32xf32> to vector<1x32xf32>
    %8 = vector.extract_strided_slice %0 {offsets = [7, 0], sizes = [1, 1], strides = [1, 1]} : vector<8x32xf32> to vector<1x1xf32>
    %c0_1 = arith.constant 0 : index
    %c0_2 = arith.constant 0 : index
    %9 = vector.load %arg1[%c0_1, %c0_2] : memref<8x24xf32, #tpu.memory_space<vmem>>, vector<8x24xf32>
    %c0_3 = arith.constant 0 : index
    %c0_4 = arith.constant 0 : index
    %10 = vector.load %arg2[%c0_3, %c0_4] : memref<24x32xf32, #tpu.memory_space<vmem>>, vector<24x32xf32>
    %cst = arith.constant dense<0.000000e+00> : vector<8x32xf32>
    %11 = tpu.matmul %9, %10, %cst {dimension_numbers = #tpu.dot_dimension_numbers<[1], [0], [0], [1], [0, 0, 1, 1], [], []>} : vector<8x24xf32>, vector<24x32xf32>, vector<8x32xf32> -> vector<8x32xf32>
    %12 = vector.broadcast %1 : vector<1x32xf32> to vector<8x32xf32>
    %13 = arith.addf %11, %12 : vector<8x32xf32>
    %cst_5 = arith.constant 0.000000e+00 : f32
    %14 = vector.broadcast %cst_5 : f32 to vector<8x32xf32>
    %15 = arith.maximumf %13, %14 : vector<8x32xf32>
    %16 = tpu.iota {dimensions = array<i32: 1>} : vector<8x32xi32>
    %c16_i32 = arith.constant 16 : i32
    %17 = vector.broadcast %c16_i32 : i32 to vector<8x32xi32>
    %18 = arith.cmpi slt, %16, %17 : vector<8x32xi32>
    %cst_6 = arith.constant 0.000000e+00 : f32
    %19 = vector.broadcast %cst_6 : f32 to vector<8x32xf32>
    %20 = arith.select %18, %15, %19 : vector<8x32xi1>, vector<8x32xf32>
    %21 = arith.subf %15, %20 : vector<8x32xf32>
    %cst_7 = arith.constant dense<0.000000e+00> : vector<8xf32>
    %22 = vector.multi_reduction <add>, %20, %cst_7 [1] : vector<8x32xf32> to vector<8xf32>
    %23 = vector.shape_cast %22 : vector<8xf32> to vector<8x1xf32>
    %cst_8 = arith.constant dense<0.000000e+00> : vector<8xf32>
    %24 = vector.multi_reduction <add>, %21, %cst_8 [1] : vector<8x32xf32> to vector<8xf32>
    %25 = vector.shape_cast %24 : vector<8xf32> to vector<8x1xf32>
    %26 = arith.mulf %20, %20 : vector<8x32xf32>
    %cst_9 = arith.constant dense<0.000000e+00> : vector<8xf32>
    %27 = vector.multi_reduction <add>, %26, %cst_9 [1] : vector<8x32xf32> to vector<8xf32>
    %28 = vector.shape_cast %27 : vector<8xf32> to vector<8x1xf32>
    %29 = arith.mulf %21, %21 : vector<8x32xf32>
    %cst_10 = arith.constant dense<0.000000e+00> : vector<8xf32>
    %30 = vector.multi_reduction <add>, %29, %cst_10 [1] : vector<8x32xf32> to vector<8xf32>
    %31 = vector.shape_cast %30 : vector<8xf32> to vector<8x1xf32>
    %cst_11 = arith.constant 6.250000e-02 : f32
    %32 = vector.broadcast %cst_11 : f32 to vector<8x1xf32>
    %33 = arith.mulf %23, %32 : vector<8x1xf32>
    %cst_12 = arith.constant 6.250000e-02 : f32
    %34 = vector.broadcast %cst_12 : f32 to vector<8x1xf32>
    %35 = arith.mulf %25, %34 : vector<8x1xf32>
    %cst_13 = arith.constant 6.250000e-02 : f32
    %36 = vector.broadcast %cst_13 : f32 to vector<8x1xf32>
    %37 = arith.mulf %28, %36 : vector<8x1xf32>
    %38 = arith.mulf %33, %33 : vector<8x1xf32>
    %39 = arith.subf %37, %38 : vector<8x1xf32>
    %cst_14 = arith.constant 6.250000e-02 : f32
    %40 = vector.broadcast %cst_14 : f32 to vector<8x1xf32>
    %41 = arith.mulf %31, %40 : vector<8x1xf32>
    %42 = arith.mulf %35, %35 : vector<8x1xf32>
    %43 = arith.subf %41, %42 : vector<8x1xf32>
    %44 = vector.shape_cast %33 : vector<8x1xf32> to vector<8x1xf32>
    %45 = vector.broadcast %44 : vector<8x1xf32> to vector<8x32xf32>
    %46 = vector.shape_cast %35 : vector<8x1xf32> to vector<8x1xf32>
    %47 = vector.broadcast %46 : vector<8x1xf32> to vector<8x32xf32>
    %48 = arith.select %18, %45, %47 : vector<8x32xi1>, vector<8x32xf32>
    %49 = vector.shape_cast %39 : vector<8x1xf32> to vector<8x1xf32>
    %50 = vector.broadcast %49 : vector<8x1xf32> to vector<8x32xf32>
    %51 = vector.shape_cast %43 : vector<8x1xf32> to vector<8x1xf32>
    %52 = vector.broadcast %51 : vector<8x1xf32> to vector<8x32xf32>
    %53 = arith.select %18, %50, %52 : vector<8x32xi1>, vector<8x32xf32>
    %54 = arith.subf %15, %48 : vector<8x32xf32>
    %cst_15 = arith.constant 9.99999974E-6 : f32
    %55 = vector.broadcast %cst_15 : f32 to vector<8x32xf32>
    %56 = arith.addf %53, %55 : vector<8x32xf32>
    %57 = math.rsqrt %56 : vector<8x32xf32>
    %58 = arith.mulf %54, %57 : vector<8x32xf32>
    %59 = vector.broadcast %2 : vector<1x32xf32> to vector<8x32xf32>
    %60 = arith.mulf %58, %59 : vector<8x32xf32>
    %61 = vector.broadcast %3 : vector<1x32xf32> to vector<8x32xf32>
    %62 = arith.addf %60, %61 : vector<8x32xf32>
    %c0_16 = arith.constant 0 : index
    %c0_17 = arith.constant 0 : index
    %63 = vector.load %arg3[%c0_16, %c0_17] : memref<32x32xf32, #tpu.memory_space<vmem>>, vector<32x32xf32>
    %cst_18 = arith.constant dense<0.000000e+00> : vector<8x32xf32>
    %64 = tpu.matmul %62, %63, %cst_18 {dimension_numbers = #tpu.dot_dimension_numbers<[1], [0], [0], [1], [0, 0, 1, 1], [], []>} : vector<8x32xf32>, vector<32x32xf32>, vector<8x32xf32> -> vector<8x32xf32>
    %65 = vector.broadcast %4 : vector<1x32xf32> to vector<8x32xf32>
    %66 = arith.addf %64, %65 : vector<8x32xf32>
    %cst_19 = arith.constant 0.000000e+00 : f32
    %67 = vector.broadcast %cst_19 : f32 to vector<8x32xf32>
    %68 = arith.maximumf %66, %67 : vector<8x32xf32>
    %cst_20 = arith.constant dense<0.000000e+00> : vector<8xf32>
    %69 = vector.multi_reduction <add>, %68, %cst_20 [1] : vector<8x32xf32> to vector<8xf32>
    %70 = vector.shape_cast %69 : vector<8xf32> to vector<8x1xf32>
    %cst_21 = arith.constant 3.125000e-02 : f32
    %71 = vector.broadcast %cst_21 : f32 to vector<8x1xf32>
    %72 = arith.mulf %70, %71 : vector<8x1xf32>
    %73 = arith.mulf %68, %68 : vector<8x32xf32>
    %cst_22 = arith.constant dense<0.000000e+00> : vector<8xf32>
    %74 = vector.multi_reduction <add>, %73, %cst_22 [1] : vector<8x32xf32> to vector<8xf32>
    %75 = vector.shape_cast %74 : vector<8xf32> to vector<8x1xf32>
    %cst_23 = arith.constant 3.125000e-02 : f32
    %76 = vector.broadcast %cst_23 : f32 to vector<8x1xf32>
    %77 = arith.mulf %75, %76 : vector<8x1xf32>
    %78 = arith.mulf %72, %72 : vector<8x1xf32>
    %79 = arith.subf %77, %78 : vector<8x1xf32>
    %80 = vector.broadcast %72 : vector<8x1xf32> to vector<8x32xf32>
    %81 = arith.subf %68, %80 : vector<8x32xf32>
    %cst_24 = arith.constant 9.99999974E-6 : f32
    %82 = vector.broadcast %cst_24 : f32 to vector<8x1xf32>
    %83 = arith.addf %79, %82 : vector<8x1xf32>
    %84 = math.rsqrt %83 : vector<8x1xf32>
    %85 = vector.broadcast %84 : vector<8x1xf32> to vector<8x32xf32>
    %86 = arith.mulf %81, %85 : vector<8x32xf32>
    %87 = vector.broadcast %5 : vector<1x32xf32> to vector<8x32xf32>
    %88 = arith.mulf %86, %87 : vector<8x32xf32>
    %89 = vector.broadcast %6 : vector<1x32xf32> to vector<8x32xf32>
    %90 = arith.addf %88, %89 : vector<8x32xf32>
    %91 = vector.broadcast %7 : vector<1x32xf32> to vector<8x32xf32>
    %92 = arith.mulf %90, %91 : vector<8x32xf32>
    %cst_25 = arith.constant dense<0.000000e+00> : vector<8xf32>
    %93 = vector.multi_reduction <add>, %92, %cst_25 [1] : vector<8x32xf32> to vector<8xf32>
    %94 = vector.shape_cast %93 : vector<8xf32> to vector<8x1xf32>
    %95 = vector.broadcast %8 : vector<1x1xf32> to vector<8x1xf32>
    %96 = arith.addf %94, %95 : vector<8x1xf32>
    %c0_26 = arith.constant 0 : index
    %c0_27 = arith.constant 0 : index
    %97 = vector.load %arg5[%c0_26, %c0_27] : memref<8x1xf32, #tpu.memory_space<vmem>>, vector<8x1xf32>
    tpu.vector_store %arg5[%c0_26, %c0_27], %96 {strides = array<i32>} : memref<8x1xf32, #tpu.memory_space<vmem>>, vector<8x1xf32>,
    return
  }
  func.func @transform_0(%arg0: i32) -> (i32, i32) {
    %c0_i32 = arith.constant 0 : i32
    %c0_i32_0 = arith.constant 0 : i32
    return %arg0, %c0_i32 : i32, i32
  }
  func.func @transform_1(%arg0: i32) -> (i32, i32) {
    %c0_i32 = arith.constant 0 : i32
    %c0_i32_0 = arith.constant 0 : i32
    %c0_i32_1 = arith.constant 0 : i32
    return %c0_i32, %c0_i32_0 : i32, i32
  }
  func.func @transform_2(%arg0: i32) -> (i32, i32) {
    %c0_i32 = arith.constant 0 : i32
    %c0_i32_0 = arith.constant 0 : i32
    %c0_i32_1 = arith.constant 0 : i32
    return %c0_i32, %c0_i32_0 : i32, i32
  }
  func.func @transform_3(%arg0: i32) -> (i32, i32) {
    %c0_i32 = arith.constant 0 : i32
    %c0_i32_0 = arith.constant 0 : i32
    %c0_i32_1 = arith.constant 0 : i32
    return %c0_i32, %c0_i32_0 : i32, i32
  }
  func.func @transform_4(%arg0: i32) -> (i32, i32) {
    %c0_i32 = arith.constant 0 : i32
    %c0_i32_0 = arith.constant 0 : i32
    return %arg0, %c0_i32 : i32, i32
  }
}

</mosaic_0001>

<llo_original>
// kernel: critic_forward.1
$region0: #{critic_forward.1}
  #allocation0 [shape = 'u32[]', space=smem, size = 0x4, offset = 0x4, fixed_abs, tag = 'smem constant byte address 0x4 - core index']
  #allocation1 [shape = 'u32[144,128]{1,0:T(1,128)}', space=vmem, size = 0x12000, scoped, tag = 'internal scratch']
  %s0 = inlined_call_operand.vmem [shape: f32[8,24], index: 0, kind: input, shape index: {}]
  %s1 = inlined_call_operand.hbm [shape: f32[24,32], index: 1, kind: input, shape index: {}]
  %s2 = inlined_call_operand.vmem [shape: f32[32,32], index: 2, kind: input, shape index: {}]
  %s3 = inlined_call_operand.hbm [shape: f32[8,32], index: 3, kind: input, shape index: {}]
  %s4 = inlined_call_operand.vmem [shape: f32[8,1], index: 4, kind: output, shape index: {}]
  %s5 = sld [smem:[#allocation0]]
  $region34: #{critic_forward.1} parent=0
    _
  %s7 = ssub.s32 1, %s5
  %s8 = scalar_select 0, %s7, %s5
  $region1: #{critic_forward.1} parent=0
    #allocation2 [shape = 'u8[12288]{0}', space=vmem, size = 0x3000, scoped, tag = 'input window, operand 1, single buffered']
    #allocation3 [shape = 's32[1]{0}', space=sflag, size = 0x4, scoped, tag = 'scoped memory for critic_forward.1']
    #allocation4 [shape = 'u8[4096]{0}', space=vmem, size = 0x1000, scoped, tag = 'input window, operand 3, single buffered']
    #allocation5 [shape = 's32[1]{0}', space=sflag, size = 0x4, scoped, tag = 'scoped memory for critic_forward.1']
    %9 = vsyncpa [#allocation3], 0
    %10 = vsyncpa [#allocation5], 0
    // Predicated region
    $region2: #{critic_forward.1} parent=1 // pred_check
      _
    $region3: #{critic_forward.1} parent=1 // pred_check_branch
      %12 = sbr.rel (0) target = $region5
    $region4: #{critic_forward.1} parent=1 // pred_region
      _
    $region5: #{critic_forward.1} parent=1 // pred_fallthru
      _
    // Predicated region
    $region6: #{critic_forward.1} parent=1 // pred_check
      _
    $region7: #{critic_forward.1} parent=1 // pred_check_branch
      %14 = sbr.rel (0) target = $region9
    $region8: #{critic_forward.1} parent=1 // pred_region
      %s16 = ssub.s32 384, 384
      %17 = vsyncadd [#allocation3], %s16
      %s18 = sshll.u32 [#allocation2], 4
      %s19 = int_to_ptr.vmem [resolvable:$true] %s18
      %24 = dma.hbm_to_vmem [thread:$0]  %s1, 384, %s19, [#allocation3], 128, 128, 8
    $region9: #{critic_forward.1} parent=1 // pred_fallthru
      _
    // Predicated region
    $region10: #{critic_forward.1} parent=1 // pred_check
      _
    $region11: #{critic_forward.1} parent=1 // pred_check_branch
      %26 = sbr.rel (0) target = $region13
    $region12: #{critic_forward.1} parent=1 // pred_region
      _
    $region13: #{critic_forward.1} parent=1 // pred_fallthru
      _
    // Predicated region
    $region14: #{critic_forward.1} parent=1 // pred_check
      _
    $region15: #{critic_forward.1} parent=1 // pred_check_branch
      %28 = sbr.rel (0) target = $region17
    $region16: #{critic_forward.1} parent=1 // pred_region
      %s30 = ssub.s32 128, 128
      %31 = vsyncadd [#allocation5], %s30
      %s33 = sshll.u32 [#allocation4], 4
      %s34 = int_to_ptr.vmem [resolvable:$true] %s33
      %36 = dma.hbm_to_vmem [thread:$0]  %s3, 128, %s34, [#allocation5]
    $region17: #{critic_forward.1} parent=1 // pred_fallthru
      _
    // Predicated region
    $region18: #{critic_forward.1} parent=1 // pred_check
      _
    $region19: #{critic_forward.1} parent=1 // pred_check_branch
      %38 = sbr.rel (0) target = $region21
    $region20: #{critic_forward.1} parent=1 // pred_region
      %39 = dma.done [#allocation3], 384
    $region21: #{critic_forward.1} parent=1 // pred_fallthru
      _
    // Predicated region
    $region22: #{critic_forward.1} parent=1 // pred_check
      _
    $region23: #{critic_forward.1} parent=1 // pred_check_branch
      %41 = sbr.rel (0) target = $region25
    $region24: #{critic_forward.1} parent=1 // pred_region
      %42 = dma.done [#allocation5], 128
    $region25: #{critic_forward.1} parent=1 // pred_fallthru
      _
    %v43 = vld [vmem:[#allocation4] sm:$0xff]
    %v44 = vld [vmem:[%s0] sm:$0xff]
    %v45 = vld [vmem:[#allocation2] sm:$0xff]
    %v46 = vld [vmem:[#allocation2 + $0x8] sm:$0xff]
    %v47 = vld [vmem:[#allocation2 + $0x10] sm:$0xff]
    %v48 = vlaneseq
    %v49 = vshrl.u32 %v48, 7
    %v50 = vsub.s32 0, %v49
    %v51 = vrot.slane %v43, %v50
    %vm52 = vcmask 195584
    %v54 = vsel %vm52, %v44, 0
    %56 = vmatprep.subr.mxu0 0.0
    %57 = vmatpush1.msra.mxu0 %v45
    %58 = vmatprep.subr.mxu0 0.0
    %59 = vmatpush1.msra.mxu0 %v46
    %60 = vmatprep.subr.mxu0 0.0
    %61 = vmatpush1.msra.mxu0 %v47
    %62 = vmatprep.subr.mxu0 0.0
    %63 = vmatpush1.msra.mxu0 0.0
    %64 = vmatprep.subr.mxu0 0.0
    %65 = vmatpush1.msra.mxu0 0.0
    %66 = vmatprep.subr.mxu0 0.0
    %67 = vmatpush1.msra.mxu0 0.0
    %68 = vmatprep.subr.mxu0 0.0
    %69 = vmatpush1.msra.mxu0 0.0
    %70 = vmatprep.subr.mxu0 0.0
    %71 = vmatpush1.msra.mxu0 0.0
    %72 = vmatprep.subr.mxu0 0.0
    %73 = vmatpush1.msra.mxu0 0.0
    %74 = vmatprep.subr.mxu0 0.0
    %75 = vmatpush1.msra.mxu0 0.0
    %76 = vmatprep.subr.mxu0 0.0
    %77 = vmatpush1.msra.mxu0 0.0
    %78 = vmatprep.subr.mxu0 0.0
    %79 = vmatpush1.msra.mxu0 0.0
    %80 = vmatprep.subr.mxu0 0.0
    %81 = vmatpush1.msra.mxu0 0.0
    %82 = vmatprep.subr.mxu0 0.0
    %83 = vmatpush1.msra.mxu0 0.0
    %84 = vmatprep.subr.mxu0 0.0
    %85 = vmatpush1.msra.mxu0 0.0
    %86 = vmatprep.subr.mxu0 0.0
    %87 = vmatpush1.msra.mxu0 0.0
    %88 = vmatprep.subr.mxu0 0.0
    %89 = vmatpush1.msra.mxu0 0.0
    %90 = vmatprep.subr.mxu0 0.0
    %91 = vmatpush1.msra.mxu0 0.0
    %92 = vmatprep.subr.mxu0 0.0
    %93 = vmatpush1.msra.mxu0 0.0
    %94 = vmatprep.subr.mxu0 0.0
    %95 = vmatpush1.msra.mxu0 0.0
    %96 = vmatprep.subr.mxu0 0.0
    %97 = vmatpush1.msra.mxu0 0.0
    %98 = vmatprep.subr.mxu0 0.0
    %99 = vmatpush1.msra.mxu0 0.0
    %100 = vmatprep.subr.mxu0 0.0
    %101 = vmatpush1.msra.mxu0 0.0
    %102 = vmatprep.subr.mxu0 0.0
    %103 = vmatpush1.msra.mxu0 0.0
    %104 = vmatprep.subr.mxu0 0.0
    %105 = vmatpush1.msra.mxu0 0.0
    %106 = vmatprep.subr.mxu0 0.0
    %107 = vmatpush1.msra.mxu0 0.0
    %108 = vmatprep.subr.mxu0 0.0
    %109 = vmatpush1.msra.mxu0 0.0
    %110 = vmatprep.subr.mxu0 0.0
    %111 = vmatpush1.msra.mxu0 0.0
    %112 = vmatprep.subr.mxu0 0.0
    %113 = vmatpush1.msra.mxu0 0.0
    %114 = vmatprep.subr.mxu0 0.0
    %115 = vmatpush1.msra.mxu0 0.0
    %116 = vmatprep.subr.mxu0 0.0
    %117 = vmatpush1.msra.mxu0 0.0
    %118 = vmatprep.subr.mxu0 0.0
    %119 = vmatpush1.msra.mxu0 0.0
    %120 = vmatprep.mubr.f32.mxu0 0.0
    %121 = vmatmul.mubr.f32.gmra.mrb[0].mxu0 %v54
    %v122 = vpop.f32.mrb[0].mxu0
    %v123 = vadd.f32 %v51, %v122
    %v124 = vpop.f32.mrb[0].mxu0
    %125 = vdwg.mxu0
    %v126 = vmax.f32 %v123, 0.0
    %v127 = vlaneseq
    %v128 = vand.u32 %v127, 127
    %vm129 = vcmp.lt.s32.totalorder %v128, 16
    %v130 = vsel %vm129, %v126, 0.0
    %v131 = vsub.f32 %v126, %v130
    %vm132 = vcmask 261120
    %v133 = vsel %vm132, %v130, 0.0
    %134 = vadd.xlane.f32.xlu0 %v133
    %v135 = vpop.xlane.xlu0 %134
    %v136 = vsel %vm132, %v131, 0.0
    %137 = vadd.xlane.f32.xlu0 %v136
    %v138 = vpop.xlane.xlu0 %137
    %v139 = vmul.f32 %v130, %v130
    %v140 = vsel %vm132, %v139, 0.0
    %141 = vadd.xlane.f32.xlu0 %v140
    %v142 = vpop.xlane.xlu0 %141
    %v143 = vmul.f32 %v131, %v131
    %v144 = vsel %vm132, %v143, 0.0
    %145 = vadd.xlane.f32.xlu0 %v144
    %v146 = vpop.xlane.xlu0 %145
    %v147 = vmul.f32 %v135, 0.0625
    %v148 = vmul.f32 %v138, 0.0625
    %v149 = vmul.f32 %v142, 0.0625
    %v150 = vmul.f32 %v147, %v147
    %v151 = vsub.f32 %v149, %v150
    %v152 = vmul.f32 %v146, 0.0625
    %v153 = vmul.f32 %v148, %v148
    %v154 = vsub.f32 %v152, %v153
    %v155 = vsel %vm129, %v147, %v148
    %v156 = vsel %vm129, %v151, %v154
    %v157 = vsub.f32 %v126, %v155
    %v158 = vadd.f32 %v156, 1e-05
    %v159 = vrsqrt.pop %v158
    %v160 = vmul.f32 %v157, %v159
    %v161 = vlaneseq
    %v162 = vshrl.u32 %v161, 7
    %v163 = vsub.s32 1, %v162
    %v164 = vrot.slane %v43, %v163
    %v165 = vmul.f32 %v160, %v164
    %v166 = vlaneseq
    %v167 = vshrl.u32 %v166, 7
    %v168 = vsub.s32 2, %v167
    %v169 = vrot.slane %v43, %v168
    %v170 = vadd.f32 %v165, %v169
    %v171 = vld [vmem:[%s2] sm:$0xff]
    %v172 = vld [vmem:[%s2 + $0x8] sm:$0xff]
    %v173 = vld [vmem:[%s2 + $0x10] sm:$0xff]
    %v174 = vld [vmem:[%s2 + $0x18] sm:$0xff]
    %v175 = vlaneseq
    %v176 = vshrl.u32 %v175, 7
    %v177 = vsub.s32 3, %v176
    %v178 = vrot.slane %v43, %v177
    %v180 = vsel %vm132, %v170, 0
    %182 = vmatprep.subr.mxu0 0.0
    %183 = vmatpush1.msra.mxu0 %v171
    %184 = vmatprep.subr.mxu0 0.0
    %185 = vmatpush1.msra.mxu0 %v172
    %186 = vmatprep.subr.mxu0 0.0
    %187 = vmatpush1.msra.mxu0 %v173
    %188 = vmatprep.subr.mxu0 0.0
    %189 = vmatpush1.msra.mxu0 %v174
    %190 = vmatprep.subr.mxu0 0.0
    %191 = vmatpush1.msra.mxu0 0.0
    %192 = vmatprep.subr.mxu0 0.0
    %193 = vmatpush1.msra.mxu0 0.0
    %194 = vmatprep.subr.mxu0 0.0
    %195 = vmatpush1.msra.mxu0 0.0
    %196 = vmatprep.subr.mxu0 0.0
    %197 = vmatpush1.msra.mxu0 0.0
    %198 = vmatprep.subr.mxu0 0.0
    %199 = vmatpush1.msra.mxu0 0.0
    %200 = vmatprep.subr.mxu0 0.0
    %201 = vmatpush1.msra.mxu0 0.0
    %202 = vmatprep.subr.mxu0 0.0
    %203 = vmatpush1.msra.mxu0 0.0
    %204 = vmatprep.subr.mxu0 0.0
    %205 = vmatpush1.msra.mxu0 0.0
    %206 = vmatprep.subr.mxu0 0.0
    %207 = vmatpush1.msra.mxu0 0.0
    %208 = vmatprep.subr.mxu0 0.0
    %209 = vmatpush1.msra.mxu0 0.0
    %210 = vmatprep.subr.mxu0 0.0
    %211 = vmatpush1.msra.mxu0 0.0
    %212 = vmatprep.subr.mxu0 0.0
    %213 = vmatpush1.msra.mxu0 0.0
    %214 = vmatprep.subr.mxu0 0.0
    %215 = vmatpush1.msra.mxu0 0.0
    %216 = vmatprep.subr.mxu0 0.0
    %217 = vmatpush1.msra.mxu0 0.0
    %218 = vmatprep.subr.mxu0 0.0
    %219 = vmatpush1.msra.mxu0 0.0
    %220 = vmatprep.subr.mxu0 0.0
    %221 = vmatpush1.msra.mxu0 0.0
    %222 = vmatprep.subr.mxu0 0.0
    %223 = vmatpush1.msra.mxu0 0.0
    %224 = vmatprep.subr.mxu0 0.0
    %225 = vmatpush1.msra.mxu0 0.0
    %226 = vmatprep.subr.mxu0 0.0
    %227 = vmatpush1.msra.mxu0 0.0
    %228 = vmatprep.subr.mxu0 0.0
    %229 = vmatpush1.msra.mxu0 0.0
    %230 = vmatprep.subr.mxu0 0.0
    %231 = vmatpush1.msra.mxu0 0.0
    %232 = vmatprep.subr.mxu0 0.0
    %233 = vmatpush1.msra.mxu0 0.0
    %234 = vmatprep.subr.mxu0 0.0
    %235 = vmatpush1.msra.mxu0 0.0
    %236 = vmatprep.subr.mxu0 0.0
    %237 = vmatpush1.msra.mxu0 0.0
    %238 = vmatprep.subr.mxu0 0.0
    %239 = vmatpush1.msra.mxu0 0.0
    %240 = vmatprep.subr.mxu0 0.0
    %241 = vmatpush1.msra.mxu0 0.0
    %242 = vmatprep.subr.mxu0 0.0
    %243 = vmatpush1.msra.mxu0 0.0
    %244 = vmatprep.subr.mxu0 0.0
    %245 = vmatpush1.msra.mxu0 0.0
    %246 = vmatprep.mubr.f32.mxu0 0.0
    %247 = vmatmul.mubr.f32.gmra.mrb[0].mxu0 %v180
    %v248 = vpop.f32.mrb[0].mxu0
    %v249 = vadd.f32 %v178, %v248
    %v250 = vpop.f32.mrb[0].mxu0
    %251 = vdwg.mxu0
    %v252 = vmax.f32 %v249, 0.0
    %v253 = vsel %vm132, %v252, 0.0
    %254 = vadd.xlane.f32.xlu0 %v253
    %v255 = vpop.xlane.xlu0 %254
    %v256 = vmul.f32 %v255, 0.03125
    %v257 = vmul.f32 %v252, %v252
    %v258 = vsel %vm132, %v257, 0.0
    %259 = vadd.xlane.f32.xlu0 %v258
    %v260 = vpop.xlane.xlu0 %259
    %v261 = vmul.f32 %v260, 0.03125
    %v262 = vmul.f32 %v256, %v256
    %v263 = vsub.f32 %v261, %v262
    %v264 = vsub.f32 %v252, %v256
    %v265 = vadd.f32 %v263, 1e-05
    %v266 = vrsqrt.pop %v265
    %v267 = vmul.f32 %v264, %v266
    %v268 = vlaneseq
    %v269 = vshrl.u32 %v268, 7
    %v270 = vsub.s32 4, %v269
    %v271 = vrot.slane %v43, %v270
    %v272 = vmul.f32 %v267, %v271
    %v273 = vlaneseq
    %v274 = vshrl.u32 %v273, 7
    %v275 = vsub.s32 5, %v274
    %v276 = vrot.slane %v43, %v275
    %v277 = vadd.f32 %v272, %v276
    %v278 = vlaneseq
    %v279 = vshrl.u32 %v278, 7
    %v280 = vsub.s32 6, %v279
    %v281 = vrot.slane %v43, %v280
    %v282 = vmul.f32 %v277, %v281
    %v283 = vsel %vm132, %v282, 0.0
    %284 = vadd.xlane.f32.xlu0 %v283
    %v285 = vpop.xlane.xlu0 %284
    %v286 = vlaneseq
    %v287 = vshrl.u32 %v286, 7
    %v288 = vsub.s32 7, %v287
    %v289 = vrot.slane %v43, %v288
    %v290 = vadd.f32 %v285, %v289
    %vm291 = vcmask 7168
    %292 = vst.msk [vmem:[%s4] sm:$0xff] %vm291, %v290
    // Predicated region
    $region26: #{critic_forward.1} parent=1 // pred_check
      _
    $region27: #{critic_forward.1} parent=1 // pred_check_branch
      %294 = sbr.rel (0) target = $region29
    $region28: #{critic_forward.1} parent=1 // pred_region
      _
    $region29: #{critic_forward.1} parent=1 // pred_fallthru
      _
    // Predicated region
    $region30: #{critic_forward.1} parent=1 // pred_check
      _
    $region31: #{critic_forward.1} parent=1 // pred_check_branch
      %296 = sbr.rel (0) target = $region33
    $region32: #{critic_forward.1} parent=1 // pred_region
      _
    $region33: #{critic_forward.1} parent=1 // pred_fallthru
      _
    %297 = vsyncpa [#allocation3], 1
    %298 = vsyncpa [#allocation5], 1

</llo_original>
